<compile_context>
chip_gen: v6e
topology: v6e:2x2x1
jax: 0.10.0
libtpu: 0.0.40
codegen_flags: <defaults>
</compile_context>

<pallas_src>
import functools

import jax
import jax.numpy as jnp
from jax.experimental import pallas as pl
from jax.experimental.pallas import tpu as pltpu

BN_EPS = 1e-5


def _cdiv(a, b):
    return (a + b - 1) // b


def _round_up(n, m):
    return ((n + m - 1) // m) * m


def binary_cell_states_kernel(x_ref, w1_ref, b1_ref, w2_ref, b2_ref, o_ref):
    # x_ref : (z_dim, bm) bf16   batch on lanes (lane-dense tile)
    # w1_ref: (H, z_dim)  bf16   PyTorch weight layout -> standard (M,K)@(K,N) matmul
    # b1_ref: (H, 1)      f32    broadcasts over batch lanes
    # w2_ref: (H, 1)      f32    second linear with eval-BN folded in
    # b2_ref: (1, 1)      f32
    # o_ref : (1, bm)     f32    lane-dense output row

    # Hidden layer: Linear -> ReLU (single-pass bf16 MXU matmul, f32 accumulation)
    h = jnp.dot(w1_ref[...], x_ref[...], preferred_element_type=jnp.float32)
    h = jnp.maximum(h + b1_ref[...], 0.0)                                # bias + ReLU on VPU

    # BatchNorm (eval) is folded into w2/b2 on the host. Dropout is identity in eval.
    # Output layer: per-feature scale + sublane reduce (avoids an N=1 MXU matmul).
    logits = jnp.sum(h * w2_ref[...], axis=0, keepdims=True) + b2_ref[...]
    o_ref[...] = jax.nn.sigmoid(logits).astype(o_ref.dtype)             # EUP


def _forward_impl(x, params, *, block_m, x_transposed):
    w1, b1, gamma, beta, mean, var, w2, b2 = params
    H, z_dim = w1.shape
    B = x.shape[0] if not x_transposed else x.shape[1]

    # ---- Fold eval-mode BatchNorm into the second linear (host side, exact) ----
    # bn(h) = h * s + (beta - mean * s),  s = gamma / sqrt(var + eps)
    # logits = bn(h) @ w2 + b2 = h @ (s * w2) + [(beta - mean*s) @ w2 + b2]
    s = gamma * jax.lax.rsqrt(var + BN_EPS)                      # (H,)
    w2_vec = w2.reshape(H).astype(jnp.float32)
    w2_col = (s * w2_vec).reshape(H, 1).astype(jnp.float32)
    b2_f = (b2.reshape(()) + jnp.dot(beta - mean * s, w2_vec)).reshape(1, 1)
    b2_f = b2_f.astype(jnp.float32)
    b1_col = b1.reshape(H, 1).astype(jnp.float32)
    w1_bf = w1.astype(jnp.bfloat16)                              # bf16 weights (tiny)

    # ---- Batch tiling ----
    # Large lane-dense tiles, but always >= 2 grid steps when B allows it so the
    # "parallel" grid axis can be split across v7x's two TensorCores.
    bm = min(block_m, _round_up(max(_cdiv(B, 2), 1), 128))
    bm = max(128, _round_up(bm, 128))
    B_pad = _round_up(B, bm)

    # Single fused host pass: (transpose) + pad + bf16 cast.  When the caller
    # already supplies x as (z_dim, B) bf16 with B % bm == 0, this is a no-op.
    xt = x if x_transposed else x.T                              # (z_dim, B)
    xt = jnp.pad(xt, ((0, 0), (0, B_pad - B))).astype(jnp.bfloat16)

    grid = (B_pad // bm,)

    def const_spec(shape):
        # Full-array block, grid-invariant.
        return pl.BlockSpec(shape, lambda i: (0, 0))

    out = pl.pallas_call(
        binary_cell_states_kernel,
        out_shape=jax.ShapeDtypeStruct((1, B_pad), jnp.float32),
        grid=grid,
        in_specs=[
            pl.BlockSpec((z_dim, bm), lambda i: (0, i)),         # x tile (batch on lanes)
            const_spec((H, z_dim)),                              # W1 (bf16)
            const_spec((H, 1)),                                  # b1
            const_spec((H, 1)),                                  # folded W2 column
            const_spec((1, 1)),                                  # folded b2
        ],
        out_specs=pl.BlockSpec((1, bm), lambda i: (0, i)),
        compiler_params=pltpu.CompilerParams(
            dimension_semantics=("parallel",),
        ),
    )(xt, w1_bf, b1_col, w2_col, b2_f)

    return out[:, :B].T                                          # (B, 1)


@functools.partial(jax.jit, static_argnames=("block_m", "x_transposed"))
def binary_cell_states_forward(x, params, *, block_m=32768, x_transposed=False):
    """Eval-mode forward pass.

    x: (B, z_dim) float32 (or (z_dim, B) if x_transposed=True).
    params: PyTorch-layout (w1, b1, gamma, beta, running_mean, running_var, w2, b2).
    Returns (B, 1) float32 probabilities.
    """
    return _forward_impl(x, params, block_m=block_m, x_transposed=x_transposed)


def init_params(key, z_dim=10, hidden_dim=32):
    """Deterministic synthetic parameters in PyTorch layout (non-trivial BN stats)."""
    k1, k2, k3, k4, k5, k6, k7, k8 = jax.random.split(key, 8)
    bound1 = 1.0 / jnp.sqrt(z_dim)
    w1 = jax.random.uniform(k1, (hidden_dim, z_dim), jnp.float32, -bound1, bound1)
    b1 = jax.random.uniform(k2, (hidden_dim,), jnp.float32, -bound1, bound1)
    gamma = jax.random.uniform(k5, (hidden_dim,), jnp.float32, 0.5, 1.5)
    beta = 0.1 * jax.random.normal(k6, (hidden_dim,), jnp.float32)
    mean = 0.1 * jax.random.normal(k7, (hidden_dim,), jnp.float32)
    var = jax.random.uniform(k8, (hidden_dim,), jnp.float32, 0.5, 1.5)
    bound2 = 1.0 / jnp.sqrt(hidden_dim)
    w2 = jax.random.uniform(k3, (1, hidden_dim), jnp.float32, -bound2, bound2)
    b2 = jax.random.uniform(k4, (1,), jnp.float32, -bound2, bound2)
    return (w1, b1, gamma, beta, mean, var, w2, b2)


def reference_forward(x, params):
    """Pure-JAX f32 reference matching the PyTorch module in eval mode."""
    w1, b1, gamma, beta, mean, var, w2, b2 = params
    h = jnp.maximum(x @ w1.T + b1, 0.0)
    h = (h - mean) / jnp.sqrt(var + BN_EPS) * gamma + beta
    return jax.nn.sigmoid(h @ w2.T + b2)


if __name__ == "__main__":
    z_dim, hidden_dim, batch = 10, 32, 200   # ragged batch exercises padding + 2 grid steps
    key = jax.random.PRNGKey(0)
    kx, kp = jax.random.split(key)

    x = jax.random.normal(kx, (batch, z_dim), jnp.float32)
    params = init_params(kp, z_dim=z_dim, hidden_dim=hidden_dim)
    ref = reference_forward(x, params)

    # Default path: (B, z_dim) input, fused transpose+pad+bf16 relayout on host.
    out = binary_cell_states_forward(x, params)
    out = jax.block_until_ready(out)
    assert out.shape == (batch, 1), out.shape
    # bf16 operands in the first matmul -> tolerance loosened vs the f32 reference.
    assert jnp.allclose(out, ref, atol=5e-3), "mismatch vs reference (default path)"

    # Pre-transposed fast path (producer already emits (z_dim, B)): skips the host transpose.
    out_t = binary_cell_states_forward(x.T, params, x_transposed=True)
    out_t = jax.block_until_ready(out_t)
    assert jnp.allclose(out_t, ref, atol=5e-3), "mismatch vs reference (transposed path)"

    print("KERNEL_OK")
</pallas_src>

<mosaic_0001>
module attributes {stable_mosaic.version = 11 : i64} {
  func.func @binary_cell_states_kernel(%arg0: i32, %arg1: memref<10x128xbf16, #tpu.memory_space<vmem>>, %arg2: memref<32x10xbf16, #tpu.memory_space<vmem>>, %arg3: memref<32x1xf32, #tpu.memory_space<vmem>>, %arg4: memref<32x1xf32, #tpu.memory_space<vmem>>, %arg5: memref<1x1xf32, #tpu.memory_space<vmem>>, %arg6: memref<1x128xf32, #tpu.memory_space<vmem>>) attributes {dimension_semantics = [#tpu.dimension_semantics<parallel>], iteration_bounds = array<i64: 2>, scalar_prefetch = 0 : i64, scratch_operands = 0 : i64, tpu.core_type = #tpu.core_type<tc>, window_params = [{transform_indices = @transform_0, window_bounds = array<i64: 10, 128>}, {pipeline_mode = #tpu.pipeline_mode<synchronous>, transform_indices = @transform_1, window_bounds = array<i64: 32, 10>}, {pipeline_mode = #tpu.pipeline_mode<synchronous>, transform_indices = @transform_2, window_bounds = array<i64: 32, 1>}, {pipeline_mode = #tpu.pipeline_mode<synchronous>, transform_indices = @transform_3, window_bounds = array<i64: 32, 1>}, {pipeline_mode = #tpu.pipeline_mode<synchronous>, transform_indices = @transform_4, window_bounds = array<i64: 1, 1>}, {transform_indices = @transform_5, window_bounds = array<i64: 1, 128>}]} {
    %c0 = arith.constant 0 : index
    %c0_0 = arith.constant 0 : index
    %0 = vector.load %arg2[%c0, %c0_0] : memref<32x10xbf16, #tpu.memory_space<vmem>>, vector<32x10xbf16>
    %c0_1 = arith.constant 0 : index
    %c0_2 = arith.constant 0 : index
    %1 = vector.load %arg1[%c0_1, %c0_2] : memref<10x128xbf16, #tpu.memory_space<vmem>>, vector<10x128xbf16>
    %cst = arith.constant dense<0.000000e+00> : vector<32x128xf32>
    %2 = tpu.matmul %0, %1, %cst {dimension_numbers = #tpu.dot_dimension_numbers<[1], [0], [0], [1], [0, 0, 1, 1], [], []>} : vector<32x10xbf16>, vector<10x128xbf16>, vector<32x128xf32> -> vector<32x128xf32>
    %c0_3 = arith.constant 0 : index
    %c0_4 = arith.constant 0 : index
    %3 = vector.load %arg3[%c0_3, %c0_4] : memref<32x1xf32, #tpu.memory_space<vmem>>, vector<32x1xf32>
    %4 = vector.broadcast %3 : vector<32x1xf32> to vector<32x128xf32>
    %5 = arith.addf %2, %4 : vector<32x128xf32>
    %cst_5 = arith.constant 0.000000e+00 : f32
    %6 = vector.broadcast %cst_5 : f32 to vector<32x128xf32>
    %7 = arith.maximumf %5, %6 : vector<32x128xf32>
    %c0_6 = arith.constant 0 : index
    %c0_7 = arith.constant 0 : index
    %8 = vector.load %arg4[%c0_6, %c0_7] : memref<32x1xf32, #tpu.memory_space<vmem>>, vector<32x1xf32>
    %9 = vector.broadcast %8 : vector<32x1xf32> to vector<32x128xf32>
    %10 = arith.mulf %7, %9 : vector<32x128xf32>
    %cst_8 = arith.constant dense<0.000000e+00> : vector<128xf32>
    %11 = vector.multi_reduction <add>, %10, %cst_8 [0] : vector<32x128xf32> to vector<128xf32>
    %12 = vector.shape_cast %11 : vector<128xf32> to vector<1x128xf32>
    %c0_9 = arith.constant 0 : index
    %c0_10 = arith.constant 0 : index
    %13 = vector.load %arg5[%c0_9, %c0_10] : memref<1x1xf32, #tpu.memory_space<vmem>>, vector<1x1xf32>
    %14 = vector.broadcast %13 : vector<1x1xf32> to vector<1x128xf32>
    %15 = arith.addf %12, %14 : vector<1x128xf32>
    %16 = arith.negf %15 : vector<1x128xf32>
    %17 = math.exp %16 : vector<1x128xf32>
    %cst_11 = arith.constant 1.000000e+00 : f32
    %18 = vector.broadcast %cst_11 : f32 to vector<1x128xf32>
    %19 = arith.addf %18, %17 : vector<1x128xf32>
    %20 = arith.divf %18, %19 : vector<1x128xf32>
    %c0_12 = arith.constant 0 : index
    %c0_13 = arith.constant 0 : index
    %21 = vector.load %arg6[%c0_12, %c0_13] : memref<1x128xf32, #tpu.memory_space<vmem>>, vector<1x128xf32>
    tpu.vector_store %arg6[%c0_12, %c0_13], %20 {strides = array<i32>} : memref<1x128xf32, #tpu.memory_space<vmem>>, vector<1x128xf32>,
    return
  }
  func.func @transform_0(%arg0: i32) -> (i32, i32) {
    %c0_i32 = arith.constant 0 : i32
    %c0_i32_0 = arith.constant 0 : i32
    return %c0_i32, %arg0 : i32, i32
  }
  func.func @transform_1(%arg0: i32) -> (i32, i32) {
    %c0_i32 = arith.constant 0 : i32
    %c0_i32_0 = arith.constant 0 : i32
    %c0_i32_1 = arith.constant 0 : i32
    return %c0_i32, %c0_i32_0 : i32, i32
  }
  func.func @transform_2(%arg0: i32) -> (i32, i32) {
    %c0_i32 = arith.constant 0 : i32
    %c0_i32_0 = arith.constant 0 : i32
    %c0_i32_1 = arith.constant 0 : i32
    return %c0_i32, %c0_i32_0 : i32, i32
  }
  func.func @transform_3(%arg0: i32) -> (i32, i32) {
    %c0_i32 = arith.constant 0 : i32
    %c0_i32_0 = arith.constant 0 : i32
    %c0_i32_1 = arith.constant 0 : i32
    return %c0_i32, %c0_i32_0 : i32, i32
  }
  func.func @transform_4(%arg0: i32) -> (i32, i32) {
    %c0_i32 = arith.constant 0 : i32
    %c0_i32_0 = arith.constant 0 : i32
    %c0_i32_1 = arith.constant 0 : i32
    return %c0_i32, %c0_i32_0 : i32, i32
  }
  func.func @transform_5(%arg0: i32) -> (i32, i32) {
    %c0_i32 = arith.constant 0 : i32
    %c0_i32_0 = arith.constant 0 : i32
    return %c0_i32, %arg0 : i32, i32
  }
}

</mosaic_0001>

<llo_original>
// kernel: binary_cell_states_forward.1
$region0: #{binary_cell_states_forward.1}
  #allocation0 [shape = 'u32[]', space=smem, size = 0x4, offset = 0x4, fixed_abs, tag = 'smem constant byte address 0x4 - core index']
  #allocation1 [shape = 'u32[144,128]{1,0:T(1,128)}', space=vmem, size = 0x12000, scoped, tag = 'internal scratch']
  #allocation2 [shape = 'f32[1,1]{1,0:T(1,128)S(1)}', space=vmem, size = 0x200, scoped, tag = 'scoped memory for binary_cell_states_forward.1']
  %s0 = inlined_call_operand.vmem [shape: bf16[10,256], index: 0, kind: input, shape index: {}]
  %s1 = inlined_call_operand.vmem [shape: bf16[32,10], index: 1, kind: input, shape index: {}]
  %s2 = inlined_call_operand.vmem [shape: f32[32,1], index: 2, kind: input, shape index: {}]
  %s3 = inlined_call_operand.vmem [shape: f32[32,1], index: 3, kind: input, shape index: {}]
  %s4 = inlined_call_operand.<no memory space> [shape: f32[1,1], index: 4, kind: input, shape index: {}]
  %s5 = inlined_call_operand.vmem [shape: f32[1,256], index: 5, kind: output, shape index: {}]
  %s6 = sld [smem:[#allocation0]]
  $region94: #{binary_cell_states_forward.1} parent=0
    _
  %s8 = ssub.s32 1, %s6
  %s9 = scalar_select 0, %s8, %s6
  %v10 = vstv %s4
  %11 = vst [vmem:[#allocation2] sm:$0x1] %v10
  $region1: #{binary_cell_states_forward.1} parent=0
    #allocation3 [shape = 'u8[8192]{0}', space=vmem, size = 0x2000, scoped, tag = 'input window, operand 0']
    loop: start=0, step=1, limit=4
    $region2: #{binary_cell_states_forward.1} parent=1 // loop_pre_header
      _
    $region3: #{binary_cell_states_forward.1} parent=1 // loop_header
      %s13 = sphi 0, %s17
      %p14 = scmp.ge.s32.totalorder %s13, 4
      %s23 = sphi 0, %s25
      %s26 = sphi 0, %s23
      %s27 = sphi 0, %s26
      %s43 = sphi 0, %s27
      %s47 = sphi 0, %s47
      %s49 = sphi 0, %s47
      %s50 = sphi 0, %s49
      %s64 = sphi 0, %s50
      %s68 = sphi 0, %s68
      %s70 = sphi 0, %s68
      %s71 = sphi 0, %s70
      %s85 = sphi 0, %s71
      %s89 = sphi 0, %s89
      %s91 = sphi 0, %s89
      %s92 = sphi 0, %s91
      %s106 = sphi 0, %s92
      %s110 = sphi 0, %s110
      %s112 = sphi 0, %s110
      %s113 = sphi 0, %s112
      %s127 = sphi 0, %s113
      %s133 = sphi 0, %s135
      %s136 = sphi 0, %s133
      %s137 = sphi 0, %s136
      %s153 = sphi 0, %s137
    $region4: #{binary_cell_states_forward.1} parent=1 // loop_header_branch
      %16 = sbr.rel (%p14) target = $region8
    $region5: #{binary_cell_states_forward.1} parent=1 // loop_body
      %s18 = ssub.s32 %s13, 1
      %s19 = ssub.s32 %s13, 2
      %s20 = sadd.s32 %s13, 1
      %s21 = ssub.s32 %s13, %s20
      %p22 = scmp.eq.s32.totalorder %s21, 0
      %s24 = sadd.s32 %s23, 1
      %s25 = scalar_select %p22, %s23, %s24
      %p28 = pneg %p22
      %p29 = scmp.eq.s32.totalorder %s13, 1
      %p30 = por %p28, %p29
      %p31 = scmp.ne.s32.totalorder %s23, %s26
      %p32 = scmp.eq.s32.totalorder %s13, 0
      %p33 = por %p31, %p32
      %p34 = scmp.ne.s32.totalorder %s23, %s26
      %p35 = scmp.eq.s32.totalorder %s18, 1
      %p36 = por %p34, %p35
      %p37 = scmp.ne.s32.totalorder %s26, %s27
      %p38 = scmp.eq.s32.totalorder %s18, 0
      %p39 = por %p37, %p38
      %p40 = scmp.ne.s32.totalorder %s26, %s27
      %p41 = scmp.eq.s32.totalorder %s19, 1
      %p42 = por %p40, %p41
      %p44 = scmp.ne.s32.totalorder %s27, %s43
      %p45 = scmp.eq.s32.totalorder %s19, 0
      %p46 = por %p44, %p45
      %s48 = sadd.s32 %s47, 1
      %p51 = scmp.eq.s32.totalorder %s13, 1
      %p52 = scmp.ne.s32.totalorder %s47, %s49
      %p53 = scmp.eq.s32.totalorder %s13, 0
      %p54 = por %p52, %p53
      %p55 = scmp.ne.s32.totalorder %s47, %s49
      %p56 = scmp.eq.s32.totalorder %s18, 1
      %p57 = por %p55, %p56
      %p58 = scmp.ne.s32.totalorder %s49, %s50
      %p59 = scmp.eq.s32.totalorder %s18, 0
      %p60 = por %p58, %p59
      %p61 = scmp.ne.s32.totalorder %s49, %s50
      %p62 = scmp.eq.s32.totalorder %s19, 1
      %p63 = por %p61, %p62
      %p65 = scmp.ne.s32.totalorder %s50, %s64
      %p66 = scmp.eq.s32.totalorder %s19, 0
      %p67 = por %p65, %p66
      %s69 = sadd.s32 %s68, 1
      %p72 = scmp.eq.s32.totalorder %s13, 1
      %p73 = scmp.ne.s32.totalorder %s68, %s70
      %p74 = scmp.eq.s32.totalorder %s13, 0
      %p75 = por %p73, %p74
      %p76 = scmp.ne.s32.totalorder %s68, %s70
      %p77 = scmp.eq.s32.totalorder %s18, 1
      %p78 = por %p76, %p77
      %p79 = scmp.ne.s32.totalorder %s70, %s71
      %p80 = scmp.eq.s32.totalorder %s18, 0
      %p81 = por %p79, %p80
      %p82 = scmp.ne.s32.totalorder %s70, %s71
      %p83 = scmp.eq.s32.totalorder %s19, 1
      %p84 = por %p82, %p83
      %p86 = scmp.ne.s32.totalorder %s71, %s85
      %p87 = scmp.eq.s32.totalorder %s19, 0
      %p88 = por %p86, %p87
      %s90 = sadd.s32 %s89, 1
      %p93 = scmp.eq.s32.totalorder %s13, 1
      %p94 = scmp.ne.s32.totalorder %s89, %s91
      %p95 = scmp.eq.s32.totalorder %s13, 0
      %p96 = por %p94, %p95
      %p97 = scmp.ne.s32.totalorder %s89, %s91
      %p98 = scmp.eq.s32.totalorder %s18, 1
      %p99 = por %p97, %p98
      %p100 = scmp.ne.s32.totalorder %s91, %s92
      %p101 = scmp.eq.s32.totalorder %s18, 0
      %p102 = por %p100, %p101
      %p103 = scmp.ne.s32.totalorder %s91, %s92
      %p104 = scmp.eq.s32.totalorder %s19, 1
      %p105 = por %p103, %p104
      %p107 = scmp.ne.s32.totalorder %s92, %s106
      %p108 = scmp.eq.s32.totalorder %s19, 0
      %p109 = por %p107, %p108
      %s111 = sadd.s32 %s110, 1
      %p114 = scmp.eq.s32.totalorder %s13, 1
      %p115 = scmp.ne.s32.totalorder %s110, %s112
      %p116 = scmp.eq.s32.totalorder %s13, 0
      %p117 = por %p115, %p116
      %p118 = scmp.ne.s32.totalorder %s110, %s112
      %p119 = scmp.eq.s32.totalorder %s18, 1
      %p120 = por %p118, %p119
      %p121 = scmp.ne.s32.totalorder %s112, %s113
      %p122 = scmp.eq.s32.totalorder %s18, 0
      %p123 = por %p121, %p122
      %p124 = scmp.ne.s32.totalorder %s112, %s113
      %p125 = scmp.eq.s32.totalorder %s19, 1
      %p126 = por %p124, %p125
      %p128 = scmp.ne.s32.totalorder %s113, %s127
      %p129 = scmp.eq.s32.totalorder %s19, 0
      %p130 = por %p128, %p129
      %s131 = ssub.s32 %s13, %s20
      %p132 = scmp.eq.s32.totalorder %s131, 0
      %s134 = sadd.s32 %s133, 1
      %s135 = scalar_select %p132, %s133, %s134
      %p138 = pneg %p132
      %p139 = scmp.eq.s32.totalorder %s13, 1
      %p140 = por %p138, %p139
      %p141 = scmp.ne.s32.totalorder %s133, %s136
      %p142 = scmp.eq.s32.totalorder %s13, 0
      %p143 = por %p141, %p142
      %p144 = scmp.ne.s32.totalorder %s133, %s136
      %p145 = scmp.eq.s32.totalorder %s18, 1
      %p146 = por %p144, %p145
      %p147 = scmp.ne.s32.totalorder %s136, %s137
      %p148 = scmp.eq.s32.totalorder %s18, 0
      %p149 = por %p147, %p148
      %p150 = scmp.ne.s32.totalorder %s136, %s137
      %p151 = scmp.eq.s32.totalorder %s19, 1
      %p152 = por %p150, %p151
      %p154 = scmp.ne.s32.totalorder %s137, %s153
      %p155 = scmp.eq.s32.totalorder %s19, 0
      %p156 = por %p154, %p155
      %p157 = scmp.le.s32.totalorder 1, %s13
      %p158 = scmp.lt.s32.totalorder %s13, 3
      %p159 = pnand %p157, %p158
      %p160 = pneg %p159
      // Predicated region
      $region9: #{binary_cell_states_forward.1} parent=5 // pred_check
        _
      $region10: #{binary_cell_states_forward.1} parent=5 // pred_check_branch
        %162 = sbr.rel (%p159) target = $region12
      $region11: #{binary_cell_states_forward.1} parent=5 // pred_region
        %s163 = ssub.s32 %s13, 1
        // Predicated region
        $region13: #{binary_cell_states_forward.1} parent=11 // pred_check
          %p164 = pneg %p60
        $region14: #{binary_cell_states_forward.1} parent=11 // pred_check_branch
          %166 = sbr.rel (%p164) target = $region16
        $region15: #{binary_cell_states_forward.1} parent=11 // pred_region
          _
        $region16: #{binary_cell_states_forward.1} parent=11 // pred_fallthru
          _
        // Predicated region
        $region17: #{binary_cell_states_forward.1} parent=11 // pred_check
          %p167 = pneg %p81
        $region18: #{binary_cell_states_forward.1} parent=11 // pred_check_branch
          %169 = sbr.rel (%p167) target = $region20
        $region19: #{binary_cell_states_forward.1} parent=11 // pred_region
          _
        $region20: #{binary_cell_states_forward.1} parent=11 // pred_fallthru
          _
        // Predicated region
        $region21: #{binary_cell_states_forward.1} parent=11 // pred_check
          %p170 = pneg %p102
        $region22: #{binary_cell_states_forward.1} parent=11 // pred_check_branch
          %172 = sbr.rel (%p170) target = $region24
        $region23: #{binary_cell_states_forward.1} parent=11 // pred_region
          _
        $region24: #{binary_cell_states_forward.1} parent=11 // pred_fallthru
          _
        // Predicated region
        $region25: #{binary_cell_states_forward.1} parent=11 // pred_check
          %p173 = pneg %p123
        $region26: #{binary_cell_states_forward.1} parent=11 // pred_check_branch
          %175 = sbr.rel (%p173) target = $region28
        $region27: #{binary_cell_states_forward.1} parent=11 // pred_region
          _
        $region28: #{binary_cell_states_forward.1} parent=11 // pred_fallthru
          _
      $region12: #{binary_cell_states_forward.1} parent=5 // pred_fallthru
        _
      %p176 = scmp.lt.s32.totalorder %s13, 2
      // Predicated region
      $region29: #{binary_cell_states_forward.1} parent=5 // pred_check
        %p177 = pneg %p176
      $region30: #{binary_cell_states_forward.1} parent=5 // pred_check_branch
        %179 = sbr.rel (%p177) target = $region32
      $region31: #{binary_cell_states_forward.1} parent=5 // pred_region
        // Predicated region
        $region33: #{binary_cell_states_forward.1} parent=31 // pred_check
          %p180 = pneg %p33
        $region34: #{binary_cell_states_forward.1} parent=31 // pred_check_branch
          %182 = sbr.rel (%p180) target = $region36
        $region35: #{binary_cell_states_forward.1} parent=31 // pred_region
          %s183 = sand.u32 %s23, 1
          %s184 = sand.u32 %s23, 1
          %s185 = smul.addr %s184, 8
          %s186 = scalar_lea.vmem [#allocation3], %s185
          %s187 = smul.addr %s13, 4
          %s188 = scalar_lea.vmem %s0, %s187
          // Predicated region
          $region37: #{binary_cell_states_forward.1} parent=35 // pred_check
            _
          $region38: #{binary_cell_states_forward.1} parent=35 // pred_check_branch
            %190 = sbr.rel (0) target = $region40
          $region39: #{binary_cell_states_forward.1} parent=35 // pred_region
            // Predicated region
            $region41: #{binary_cell_states_forward.1} parent=39 // pred_check
              _
            $region42: #{binary_cell_states_forward.1} parent=39 // pred_check_branch
              %192 = sbr.rel target = $region44
            $region43: #{binary_cell_states_forward.1} parent=39 // pred_region
              // Predicated region
              $region56: #{binary_cell_states_forward.1} parent=43 // pred_check
                _
              $region57: #{binary_cell_states_forward.1} parent=43 // pred_check_branch
                %210 = sbr.rel (0) target = $region59
              $region58: #{binary_cell_states_forward.1} parent=43 // pred_region
                loop: start=0, step=1, limit=1
                $region60: #{binary_cell_states_forward.1} parent=58 // loop_pre_header
                  _
                $region61: #{binary_cell_states_forward.1} parent=58 // loop_header
                  %s212 = sphi 0, %s216
                  %p213 = scmp.ge.s32.totalorder %s212, 1
                  %s217 = sphi %s188, %s188
                  %s218 = sphi %s186, %s186
                $region62: #{binary_cell_states_forward.1} parent=58 // loop_header_branch
                  %215 = sbr.rel (%p213) target = $region66
                $region63: #{binary_cell_states_forward.1} parent=58 // loop_body
                  _
                $region64: #{binary_cell_states_forward.1} parent=58 // loop_footer
                  %s216 = sadd.s32 1, %s212
                $region65: #{binary_cell_states_forward.1} parent=58 // loop_footer_branch
                  %211 = sbr.rel target = $region61
                $region66: #{binary_cell_states_forward.1} parent=58 // loop_exit
                  _
                %s220 = ssub.s32 16, 1
                loop: start=0, step=1, limit=1
                $region67: #{binary_cell_states_forward.1} parent=58 // loop_pre_header
                  _
                $region68: #{binary_cell_states_forward.1} parent=58 // loop_header
                  %s222 = sphi 0, %s226
                  %p223 = scmp.ge.s32.totalorder %s222, 1
                  %s227 = sphi %s188, %s188
                  %s228 = sphi %s186, %s186
                $region69: #{binary_cell_states_forward.1} parent=58 // loop_header_branch
                  %225 = sbr.rel (%p223) target = $region73
                $region70: #{binary_cell_states_forward.1} parent=58 // loop_body
                  %v229 = vld [vmem:[%s227] sm:%s220]
                  %230 = vst [vmem:[%s228] sm:%s220] %v229
                  %v231 = vld [vmem:[%s227 + $0x8] sm:%s220]
                  %232 = vst [vmem:[%s228 + $0x4] sm:%s220] %v231
                $region71: #{binary_cell_states_forward.1} parent=58 // loop_footer
                  %s226 = sadd.s32 1, %s222
                $region72: #{binary_cell_states_forward.1} parent=58 // loop_footer_branch
                  %221 = sbr.rel target = $region68
                $region73: #{binary_cell_states_forward.1} parent=58 // loop_exit
                  _
              $region59: #{binary_cell_states_forward.1} parent=43 // pred_fallthru
                _
            $region44: #{binary_cell_states_forward.1} parent=39 // pred_fallthru
              _
            // Predicated region
            $region45: #{binary_cell_states_forward.1} parent=39 // pred_check
              _
            $region46: #{binary_cell_states_forward.1} parent=39 // pred_check_branch
              %194 = sbr.rel (0) target = $region48
            $region47: #{binary_cell_states_forward.1} parent=39 // pred_region
              %s196 = ssub.s32 16, 1
              loop: start=0, step=1, limit=1
              $region49: #{binary_cell_states_forward.1} parent=47 // loop_pre_header
                _
              $region50: #{binary_cell_states_forward.1} parent=47 // loop_header
                %s198 = sphi 0, %s202
                %p199 = scmp.ge.s32.totalorder %s198, 1
                %s203 = sphi %s188, %s188
                %s204 = sphi %s186, %s186
              $region51: #{binary_cell_states_forward.1} parent=47 // loop_header_branch
                %201 = sbr.rel (%p199) target = $region55
              $region52: #{binary_cell_states_forward.1} parent=47 // loop_body
                %v205 = vld [vmem:[%s203] sm:%s196]
                %206 = vst [vmem:[%s204] sm:%s196] %v205
                %v207 = vld [vmem:[%s203 + $0x8] sm:%s196]
                %208 = vst [vmem:[%s204 + $0x4] sm:%s196] %v207
              $region53: #{binary_cell_states_forward.1} parent=47 // loop_footer
                %s202 = sadd.s32 1, %s198
              $region54: #{binary_cell_states_forward.1} parent=47 // loop_footer_branch
                %197 = sbr.rel target = $region50
              $region55: #{binary_cell_states_forward.1} parent=47 // loop_exit
                _
            $region48: #{binary_cell_states_forward.1} parent=39 // pred_fallthru
              _
          $region40: #{binary_cell_states_forward.1} parent=35 // pred_fallthru
            _
          %233 = vnop
        $region36: #{binary_cell_states_forward.1} parent=31 // pred_fallthru
          _
      $region32: #{binary_cell_states_forward.1} parent=5 // pred_fallthru
        _
      %p234 = scmp.le.s32.totalorder 1, %s13
      %p235 = scmp.lt.s32.totalorder %s13, 3
      %p236 = pnand %p234, %p235
      %p237 = pneg %p236
      // Predicated region
      $region74: #{binary_cell_states_forward.1} parent=5 // pred_check
        _
      $region75: #{binary_cell_states_forward.1} parent=5 // pred_check_branch
        %239 = sbr.rel (%p236) target = $region77
      $region76: #{binary_cell_states_forward.1} parent=5 // pred_region
        %s240 = ssub.s32 %s13, 1
        %s241 = sand.u32 %s26, 1
        %s242 = sand.u32 %s26, 1
        %s243 = smul.addr %s242, 8
        %s244 = scalar_lea.vmem [#allocation3], %s243
        // Predicated region
        $region78: #{binary_cell_states_forward.1} parent=76 // pred_check
          %p245 = pneg %p39
        $region79: #{binary_cell_states_forward.1} parent=76 // pred_check_branch
          %247 = sbr.rel (%p245) target = $region81
        $region80: #{binary_cell_states_forward.1} parent=76 // pred_region
          _
        $region81: #{binary_cell_states_forward.1} parent=76 // pred_fallthru
          _
        %s248 = sand.u32 %s26, 1
        %s249 = sand.u32 %s26, 1
        %s250 = smul.addr %s249, 8
        %s251 = scalar_lea.vmem [#allocation3], %s250
        %p252 = pneg %p39
        %p253 = pneg %p36
        %p254 = pneg %p60
        %p255 = pneg %p57
        %p256 = pneg %p81
        %p257 = pneg %p78
        %p258 = pneg %p102
        %p259 = pneg %p99
        %p260 = pneg %p123
        %p261 = pneg %p120
        %p262 = pneg %p149
        %p263 = pneg %p146
        %p264 = scmp.lt.s32.totalorder %s18, 1
        %s265 = scalar_select %p264, %s18, 1
        %s266 = scalar_lea.vmem %s5, %s265
        %p267 = scmp.lt.s32.totalorder %s18, 1
        %s268 = scalar_select %p267, %s18, 1
        %s269 = scalar_lea.vmem %s5, %s268
        %v271 = vld [vmem:[%s1] sm:$0xf]
        %v272 = vld [vmem:[%s1 + $0x4] sm:$0xf]
        %v273 = vld [vmem:[%s1 + $0x8] sm:$0xf]
        %v274 = vld [vmem:[%s1 + $0xc] sm:$0xf]
        %v275 = vld [vmem:[%s244] sm:$0xf]
        %v276 = vld [vmem:[%s244 + $0x4] sm:$0x1]
        %v277 = vld [vmem:[%s2] sm:$0xff]
        %v278 = vld [vmem:[%s2 + $0x8] sm:$0xff]
        %v279 = vld [vmem:[%s2 + $0x10] sm:$0xff]
        %v280 = vld [vmem:[%s2 + $0x18] sm:$0xff]
        %282 = vset.pattern.permute.xlu0 0
        %283 = vperm.xlu0 %282, %v277
        %v284 = vpop.permute.xlu0 %283
        %287 = vset.pattern.permute.xlu0 0
        %288 = vperm.xlu0 %287, %v278
        %v289 = vpop.permute.xlu0 %288
        %292 = vset.pattern.permute.xlu0 0
        %293 = vperm.xlu0 %292, %v279
        %v294 = vpop.permute.xlu0 %293
        %297 = vset.pattern.permute.xlu0 0
        %298 = vperm.xlu0 %297, %v280
        %v299 = vpop.permute.xlu0 %298
        %v305 = vunpack.c.l.b16 %v271
        %v306 = vunpack.c.l.b16 %v272
        %v307 = vunpack.c.l.b16 %v273
        %v308 = vunpack.c.l.b16 %v274
        %v309 = vpack.c.b16 %v306, %v305
        %v310 = vpack.c.b16 %v308, %v307
        %v313 = vunpack.c.l.b16 %v275
        %v314 = vunpack.c.l.b16 %v276
        %v315 = vpack.c.b16 %v314, %v313
        %vm316 = vcmask 80896
        %v318 = vsel %vm316, %v309, 0
        %v321 = vsel %vm316, %v310, 0
        %vm323 = vcmask 1044480
        %v325 = vsel %vm323, %v315, 0
        %327 = vmatprep.subr.bf16.mxu0 0
        %328 = vmatpush1.bf16.msra.mxu0 0
        %329 = vmatprep.subr.bf16.mxu0 0
        %330 = vmatpush1.bf16.msra.mxu0 0
        %331 = vmatprep.subr.bf16.mxu0 0
        %332 = vmatpush1.bf16.msra.mxu0 0
        %333 = vmatprep.subr.bf16.mxu0 0
        %334 = vmatpush1.bf16.msra.mxu0 0
        %335 = vmatprep.subr.bf16.mxu0 0
        %336 = vmatpush1.bf16.msra.mxu0 0
        %337 = vmatprep.subr.bf16.mxu0 0
        %338 = vmatpush1.bf16.msra.mxu0 0
        %339 = vmatprep.subr.bf16.mxu0 0
        %340 = vmatpush1.bf16.msra.mxu0 0
        %341 = vmatprep.subr.bf16.mxu0 0
        %342 = vmatpush1.bf16.msra.mxu0 %v325
        %343 = vmatprep.subr.bf16.mxu0 0
        %344 = vmatpush2.bf16.msra.mxu0 0
        %345 = vmatprep.subr.bf16.mxu0 0
        %346 = vmatpush2.bf16.msra.mxu0 0
        %347 = vmatprep.subr.bf16.mxu0 0
        %348 = vmatpush2.bf16.msra.mxu0 0
        %349 = vmatprep.subr.bf16.mxu0 0
        %350 = vmatpush2.bf16.msra.mxu0 0
        %351 = vmatprep.subr.bf16.mxu0 0
        %352 = vmatpush2.bf16.msra.mxu0 0
        %353 = vmatprep.subr.bf16.mxu0 0
        %354 = vmatpush2.bf16.msra.mxu0 0
        %355 = vmatprep.subr.bf16.mxu0 0
        %356 = vmatpush2.bf16.msra.mxu0 0
        %357 = vmatprep.subr.bf16.mxu0 0
        %358 = vmatpush2.bf16.msra.mxu0 0
        %359 = vmatprep.mubr.bf16.mxu0 0
        %360 = vmatmul.mubr.bf16.gmra.mxu0 %v318
        %v361 = vpop.f32.mrf.mxu0
        %v362 = vadd.f32 %v284, %v361
        %v363 = vpop.f32.mrf.mxu0
        %v364 = vpop.f32.mrf.mxu0
        %v365 = vadd.f32 %v289, %v364
        %v366 = vpop.f32.mrf.mxu0
        %367 = vmatprep.mubr.bf16.mxu0 0
        %368 = vmatmul.mubr.bf16.gmra.mxu0 %v321
        %v369 = vpop.f32.mrf.mxu0
        %v370 = vadd.f32 %v294, %v369
        %v371 = vpop.f32.mrf.mxu0
        %v372 = vpop.f32.mrf.mxu0
        %v373 = vadd.f32 %v299, %v372
        %v374 = vpop.f32.mrf.mxu0
        %375 = vdwg.mxu0
        %v376 = vmax.f32 %v362, 0.0
        %v377 = vmax.f32 %v365, 0.0
        %v378 = vmax.f32 %v370, 0.0
        %v379 = vmax.f32 %v373, 0.0
        %v380 = vld [vmem:[%s3] sm:$0xff]
        %v381 = vld [vmem:[%s3 + $0x8] sm:$0xff]
        %v382 = vld [vmem:[%s3 + $0x10] sm:$0xff]
        %v383 = vld [vmem:[%s3 + $0x18] sm:$0xff]
        %385 = vset.pattern.permute.xlu0 0
        %386 = vperm.xlu0 %385, %v380
        %v387 = vpop.permute.xlu0 %386
        %390 = vset.pattern.permute.xlu0 0
        %391 = vperm.xlu0 %390, %v381
        %v392 = vpop.permute.xlu0 %391
        %395 = vset.pattern.permute.xlu0 0
        %396 = vperm.xlu0 %395, %v382
        %v397 = vpop.permute.xlu0 %396
        %400 = vset.pattern.permute.xlu0 0
        %401 = vperm.xlu0 %400, %v383
        %v402 = vpop.permute.xlu0 %401
        %v404 = vmul.f32 %v376, %v387
        %v405 = vmul.f32 %v377, %v392
        %v406 = vmul.f32 %v378, %v397
        %v407 = vmul.f32 %v379, %v402
        %v408 = vadd.f32 %v404, %v405
        %v409 = vadd.f32 %v408, %v406
        %v410 = vadd.f32 %v409, %v407
        %v411 = vrot.slane %v410, 4
        %v412 = vadd.f32 %v410, %v411
        %v413 = vrot.slane %v412, 2
        %v414 = vadd.f32 %v412, %v413
        %v415 = vrot.slane %v414, 1
        %v416 = vadd.f32 %v414, %v415
        %v417 = vld [vmem:[#allocation2] sm:$0x1]
        %419 = vset.pattern.permute.xlu0 0
        %420 = vperm.xlu0 %419, %v417
        %v421 = vpop.permute.xlu0 %420
        %v423 = vlaneseq
        %v424 = vshrl.u32 %v423, 7
        %v425 = vsub.s32 0, %v424
        %v426 = vrot.slane %v421, %v425
        %v427 = vadd.f32 %v416, %v426
        %v428 = vxor.u32 %v427, 2147483648
        %v429 = vmul.f32 %v428, 1.442695
        %v430 = vpow.pop %v429
        %v431 = vadd.f32 %v430, 1.0
        %v432 = vrcp.pop %v431
        %v433 = vmul.f32 1.0, %v432
        %434 = vst [vmem:[%s269] sm:$0x1] %v433
        %p435 = scmp.lt.s32.totalorder %s18, 1
        %s436 = scalar_select %p435, %s18, 1
        %s437 = scalar_lea.vmem %s5, %s436
        // Predicated region
        $region82: #{binary_cell_states_forward.1} parent=76 // pred_check
          %p438 = pneg %p146
        $region83: #{binary_cell_states_forward.1} parent=76 // pred_check_branch
          %440 = sbr.rel (%p438) target = $region85
        $region84: #{binary_cell_states_forward.1} parent=76 // pred_region
          _
        $region85: #{binary_cell_states_forward.1} parent=76 // pred_fallthru
          _
      $region77: #{binary_cell_states_forward.1} parent=5 // pred_fallthru
        _
      %p441 = scmp.le.s32.totalorder 2, %s13
      // Predicated region
      $region86: #{binary_cell_states_forward.1} parent=5 // pred_check
        %p442 = pneg %p441
      $region87: #{binary_cell_states_forward.1} parent=5 // pred_check_branch
        %444 = sbr.rel (%p442) target = $region89
      $region88: #{binary_cell_states_forward.1} parent=5 // pred_region
        %s445 = ssub.s32 %s13, 2
        // Predicated region
        $region90: #{binary_cell_states_forward.1} parent=88 // pred_check
          %p446 = pneg %p152
        $region91: #{binary_cell_states_forward.1} parent=88 // pred_check_branch
          %448 = sbr.rel (%p446) target = $region93
        $region92: #{binary_cell_states_forward.1} parent=88 // pred_region
          %p449 = scmp.lt.s32.totalorder %s19, 1
          %s450 = scalar_select %p449, %s19, 1
          %s451 = scalar_lea.vmem %s5, %s450
        $region93: #{binary_cell_states_forward.1} parent=88 // pred_fallthru
          _
      $region89: #{binary_cell_states_forward.1} parent=5 // pred_fallthru
        _
    $region6: #{binary_cell_states_forward.1} parent=1 // loop_footer
      %s17 = sadd.s32 1, %s13
    $region7: #{binary_cell_states_forward.1} parent=1 // loop_footer_branch
      %12 = sbr.rel target = $region3
    $region8: #{binary_cell_states_forward.1} parent=1 // loop_exit
      _

</llo_original>
